<compile_context>
chip_gen: v7x
topology: tpu7x:2x2x1
jax: 0.10.0
libtpu: 0.0.40
codegen_flags: <defaults>
</compile_context>

<pallas_src>
import functools

import jax
import jax.numpy as jnp
import numpy as np
from jax.experimental import pallas as pl
from jax.experimental.pallas import tpu as pltpu


# ---------------------------------------------------------------------------
# Deterministic parameter init, mirroring torch's layer_init:
#   orthogonal_(weight, gain=sqrt(2)), constant_(bias, 0.0)
# ---------------------------------------------------------------------------
def orthogonal_init(key, shape, gain):
    """Orthogonal init for a (out_features, in_features) weight, like torch."""
    rows, cols = shape
    n = max(rows, cols)
    a = jax.random.normal(key, (n, n), dtype=jnp.float32)
    q, r = jnp.linalg.qr(a)
    q = q * jnp.sign(jnp.diag(r))  # sign correction (same trick torch uses)
    return gain * q[:rows, :cols]


def make_params(state_dim, key):
    k1, k2, k3 = jax.random.split(key, 3)
    gain = float(np.sqrt(2.0))
    w1 = orthogonal_init(k1, (64, state_dim), gain)   # (out, in)
    w2 = orthogonal_init(k2, (64, 64), gain)
    w3 = orthogonal_init(k3, (1, 64), gain)
    b1 = jnp.zeros((64,), dtype=jnp.float32)
    b2 = jnp.zeros((64,), dtype=jnp.float32)
    return dict(
        # Pre-transposed to (in, out); bf16 operands for the MXU (f32 accumulate).
        w1t=w1.T.astype(jnp.bfloat16),                       # (state_dim, 64)
        w2t=w2.T.astype(jnp.bfloat16),                       # (64, 64)
        # b1 / b2 / w3 packed into one small f32 block: rows = [b1, b2, w3].
        bw=jnp.stack([b1, b2, w3[0].astype(jnp.float32)]),   # (3, 64)
        b3=jnp.zeros((1,), dtype=jnp.float32),               # scalar bias -> SMEM
    )


# ---------------------------------------------------------------------------
# Pallas kernel: fused 3-layer MLP for one (TB, state_dim) batch tile.
# ---------------------------------------------------------------------------
def value_kernel(x_ref, w1t_ref, w2t_ref, bw_ref, b3_ref, o_ref, *, tanh_dtype):
    x = x_ref[...].astype(jnp.bfloat16)                   # in-kernel cast (TB, S)
    b1 = bw_ref[0:1, :]                                    # (1, 64) f32
    b2 = bw_ref[1:2, :]                                    # (1, 64) f32
    w3 = bw_ref[2:3, :]                                    # (1, 64) f32

    pre1 = jnp.dot(x, w1t_ref[...], preferred_element_type=jnp.float32) + b1
    h1 = jnp.tanh(pre1.astype(tanh_dtype)).astype(jnp.bfloat16)      # (TB, 64)
    pre2 = jnp.dot(h1, w2t_ref[...], preferred_element_type=jnp.float32) + b2
    h2 = jnp.tanh(pre2.astype(tanh_dtype)).astype(jnp.float32)       # (TB, 64)

    # Final Linear(64 -> 1): VPU multiply + lane reduction (skip skinny MXU op).
    v = jnp.sum(h2 * w3, axis=-1, keepdims=True) + b3_ref[0]         # (TB, 1)
    o_ref[...] = v


def _tanh_dtype_for_device():
    """bf16 tanh on v6e/v7x (EUP bf16 path), f32 on v5e and older."""
    try:
        kind = jax.devices()[0].device_kind.lower()
    except Exception:
        return jnp.float32
    for old in ("v2", "v3", "v4", "v5"):
        if old in kind:
            return jnp.float32
    return jnp.bfloat16


def value_forward(x, params, *, block_b=4096, tanh_dtype=None):
    """Forward pass. Returns value(x).squeeze(1) -> shape (B,) float32."""
    B, S = x.shape
    if tanh_dtype is None:
        tanh_dtype = _tanh_dtype_for_device()

    # Batch tile: full-extent single block when small, else 128-aligned tiles.
    if B <= 128:
        TB = B
    else:
        TB = max(128, (min(block_b, B) // 128) * 128)
    G = pl.cdiv(B, TB)                     # ragged tail handled by Pallas masking

    # Scoped VMEM budget: double-buffered x tile + out column + resident weights.
    need = 2 * TB * S * 4 + 2 * TB * 4 + (S * 64 + 64 * 64) * 2 + (3 * 64 + 1) * 4
    vmem_limit = int(min(48 * 2**20, max(16 * 2**20, 2 * need)))

    const = lambda i: (0, 0)               # weights stay VMEM-resident across steps
    out = pl.pallas_call(
        functools.partial(value_kernel, tanh_dtype=tanh_dtype),
        out_shape=jax.ShapeDtypeStruct((B, 1), jnp.float32),
        grid=(G,),
        in_specs=[
            pl.BlockSpec((TB, S), lambda i: (i, 0)),    # x: batch-tiled, pipelined
            pl.BlockSpec((S, 64), const),               # w1t (bf16)
            pl.BlockSpec((64, 64), const),              # w2t (bf16)
            pl.BlockSpec((3, 64), const),               # [b1; b2; w3] (f32)
            pl.BlockSpec(memory_space=pltpu.MemorySpace.SMEM),  # b3 scalar
        ],
        out_specs=pl.BlockSpec((TB, 1), lambda i: (i, 0)),
        compiler_params=pltpu.CompilerParams(
            dimension_semantics=("parallel",),          # shard batch tiles (v7x TCs)
            vmem_limit_bytes=vmem_limit,
        ),
    )(x, params["w1t"], params["w2t"], params["bw"], params["b3"])

    return out[:, 0]                      # the .squeeze(1)


# ---------------------------------------------------------------------------
# Pure-JAX reference (mirrors the kernel's dtype policy) for correctness check.
# ---------------------------------------------------------------------------
def value_ref(x, params, tanh_dtype):
    xb = x.astype(jnp.bfloat16)
    b1 = params["bw"][0:1, :]
    b2 = params["bw"][1:2, :]
    w3 = params["bw"][2:3, :]
    pre1 = jnp.dot(xb, params["w1t"], preferred_element_type=jnp.float32) + b1
    h1 = jnp.tanh(pre1.astype(tanh_dtype)).astype(jnp.bfloat16)
    pre2 = jnp.dot(h1, params["w2t"], preferred_element_type=jnp.float32) + b2
    h2 = jnp.tanh(pre2.astype(tanh_dtype)).astype(jnp.float32)
    return jnp.sum(h2 * w3, axis=-1) + params["b3"][0]


if __name__ == "__main__":
    key = jax.random.PRNGKey(0)
    k_params, k_x = jax.random.split(key)

    # Small demo shapes; block_b=128 deliberately forces a multi-block grid
    # (G = cdiv(300, 128) = 3) with a ragged tail block so both the pipelined
    # path and the boundary-masking path are exercised end to end.
    batch, state_dim = 300, 32
    params = make_params(state_dim, k_params)
    x = jax.random.normal(k_x, (batch, state_dim), dtype=jnp.float32)

    tanh_dtype = _tanh_dtype_for_device()
    out = jax.block_until_ready(value_forward(x, params, block_b=128,
                                              tanh_dtype=tanh_dtype))
    ref = value_ref(x, params, tanh_dtype)

    assert out.shape == (batch,), out.shape
    # Tolerance covers bf16 MXU operands / bf16 tanh (v6e/v7x) implementation deltas.
    np.testing.assert_allclose(np.asarray(out), np.asarray(ref), rtol=2e-2, atol=2e-2)

    print("KERNEL_OK")
</pallas_src>

<mosaic_0001>
module attributes {stable_mosaic.version = 11 : i64} {
  func.func @value_kernel(%arg0: i32, %arg1: memref<128x32xf32, #tpu.memory_space<vmem>>, %arg2: memref<32x64xbf16, #tpu.memory_space<vmem>>, %arg3: memref<64x64xbf16, #tpu.memory_space<vmem>>, %arg4: memref<3x64xf32, #tpu.memory_space<vmem>>, %arg5: memref<1xf32, #tpu.memory_space<smem>>, %arg6: memref<128x1xf32, #tpu.memory_space<vmem>>) attributes {dimension_semantics = [#tpu.dimension_semantics<parallel>], iteration_bounds = array<i64: 3>, scalar_prefetch = 0 : i64, scratch_operands = 0 : i64, tpu.core_type = #tpu.core_type<tc>, window_params = [{transform_indices = @transform_0, window_bounds = array<i64: 128, 32>}, {pipeline_mode = #tpu.pipeline_mode<synchronous>, transform_indices = @transform_1, window_bounds = array<i64: 32, 64>}, {pipeline_mode = #tpu.pipeline_mode<synchronous>, transform_indices = @transform_2, window_bounds = array<i64: 64, 64>}, {pipeline_mode = #tpu.pipeline_mode<synchronous>, transform_indices = @transform_3, window_bounds = array<i64: 3, 64>}, {transform_indices = @transform_4, window_bounds = array<i64: 1>}, {transform_indices = @transform_5, window_bounds = array<i64: 128, 1>}]} {
    %c0 = arith.constant 0 : index
    %c0_0 = arith.constant 0 : index
    %0 = vector.load %arg1[%c0, %c0_0] : memref<128x32xf32, #tpu.memory_space<vmem>>, vector<128x32xf32>
    %1 = arith.truncf %0 : vector<128x32xf32> to vector<128x32xbf16>
    %c0_1 = arith.constant 0 : index
    %c0_2 = arith.constant 0 : index
    %2 = vector.load %arg4[%c0_1, %c0_2] : memref<3x64xf32, #tpu.memory_space<vmem>>, vector<1x64xf32>
    %c1 = arith.constant 1 : index
    %c0_3 = arith.constant 0 : index
    %3 = vector.load %arg4[%c1, %c0_3] : memref<3x64xf32, #tpu.memory_space<vmem>>, vector<1x64xf32>
    %c2 = arith.constant 2 : index
    %c0_4 = arith.constant 0 : index
    %4 = vector.load %arg4[%c2, %c0_4] : memref<3x64xf32, #tpu.memory_space<vmem>>, vector<1x64xf32>
    %c0_5 = arith.constant 0 : index
    %c0_6 = arith.constant 0 : index
    %5 = vector.load %arg2[%c0_5, %c0_6] : memref<32x64xbf16, #tpu.memory_space<vmem>>, vector<32x64xbf16>
    %cst = arith.constant dense<0.000000e+00> : vector<128x64xf32>
    %6 = tpu.matmul %1, %5, %cst {dimension_numbers = #tpu.dot_dimension_numbers<[1], [0], [0], [1], [0, 0, 1, 1], [], []>} : vector<128x32xbf16>, vector<32x64xbf16>, vector<128x64xf32> -> vector<128x64xf32>
    %7 = vector.broadcast %2 : vector<1x64xf32> to vector<128x64xf32>
    %8 = arith.addf %6, %7 : vector<128x64xf32>
    %9 = arith.truncf %8 : vector<128x64xf32> to vector<128x64xbf16>
    %10 = math.tanh %9 : vector<128x64xbf16>
    %c0_7 = arith.constant 0 : index
    %c0_8 = arith.constant 0 : index
    %11 = vector.load %arg3[%c0_7, %c0_8] : memref<64x64xbf16, #tpu.memory_space<vmem>>, vector<64x64xbf16>
    %cst_9 = arith.constant dense<0.000000e+00> : vector<128x64xf32>
    %12 = tpu.matmul %10, %11, %cst_9 {dimension_numbers = #tpu.dot_dimension_numbers<[1], [0], [0], [1], [0, 0, 1, 1], [], []>} : vector<128x64xbf16>, vector<64x64xbf16>, vector<128x64xf32> -> vector<128x64xf32>
    %13 = vector.broadcast %3 : vector<1x64xf32> to vector<128x64xf32>
    %14 = arith.addf %12, %13 : vector<128x64xf32>
    %15 = arith.truncf %14 : vector<128x64xf32> to vector<128x64xbf16>
    %16 = math.tanh %15 : vector<128x64xbf16>
    %17 = arith.extf %16 : vector<128x64xbf16> to vector<128x64xf32>
    %18 = vector.broadcast %4 : vector<1x64xf32> to vector<128x64xf32>
    %19 = arith.mulf %17, %18 : vector<128x64xf32>
    %cst_10 = arith.constant dense<0.000000e+00> : vector<128xf32>
    %20 = vector.multi_reduction <add>, %19, %cst_10 [1] : vector<128x64xf32> to vector<128xf32>
    %21 = vector.shape_cast %20 : vector<128xf32> to vector<128x1xf32>
    %c0_11 = arith.constant 0 : index
    %22 = memref.load %arg5[%c0_11] : memref<1xf32, #tpu.memory_space<smem>>
    %23 = vector.broadcast %22 : f32 to vector<128x1xf32>
    %24 = arith.addf %21, %23 : vector<128x1xf32>
    %c0_12 = arith.constant 0 : index
    %c0_13 = arith.constant 0 : index
    %25 = vector.load %arg6[%c0_12, %c0_13] : memref<128x1xf32, #tpu.memory_space<vmem>>, vector<128x1xf32>
    tpu.vector_store %arg6[%c0_12, %c0_13], %24 {strides = array<i32>} : memref<128x1xf32, #tpu.memory_space<vmem>>, vector<128x1xf32>,
    return
  }
  func.func @transform_0(%arg0: i32) -> (i32, i32) {
    %c0_i32 = arith.constant 0 : i32
    %c0_i32_0 = arith.constant 0 : i32
    return %arg0, %c0_i32 : i32, i32
  }
  func.func @transform_1(%arg0: i32) -> (i32, i32) {
    %c0_i32 = arith.constant 0 : i32
    %c0_i32_0 = arith.constant 0 : i32
    %c0_i32_1 = arith.constant 0 : i32
    return %c0_i32, %c0_i32_0 : i32, i32
  }
  func.func @transform_2(%arg0: i32) -> (i32, i32) {
    %c0_i32 = arith.constant 0 : i32
    %c0_i32_0 = arith.constant 0 : i32
    %c0_i32_1 = arith.constant 0 : i32
    return %c0_i32, %c0_i32_0 : i32, i32
  }
  func.func @transform_3(%arg0: i32) -> (i32, i32) {
    %c0_i32 = arith.constant 0 : i32
    %c0_i32_0 = arith.constant 0 : i32
    %c0_i32_1 = arith.constant 0 : i32
    return %c0_i32, %c0_i32_0 : i32, i32
  }
  func.func @transform_4(%arg0: i32) -> i32 {
    %c0_i32 = arith.constant 0 : i32
    %c0_i32_0 = arith.constant 0 : i32
    return %c0_i32 : i32
  }
  func.func @transform_5(%arg0: i32) -> (i32, i32) {
    %c0_i32 = arith.constant 0 : i32
    %c0_i32_0 = arith.constant 0 : i32
    return %arg0, %c0_i32 : i32, i32
  }
}

</mosaic_0001>

<llo_original>
// kernel: tpu_custom_call.1
$region0: #{tpu_custom_call.1}
  #allocation0 [shape = 'u32[]', space=smem, size = 0x4, offset = 0x4, fixed_abs, tag = 'smem constant byte address 0x4 - core index']
  #allocation1 [shape = 'u32[144,128]{1,0:T(1,128)}', space=vmem, size = 0x12000, scoped, tag = 'internal scratch']
  #allocation2 [shape = 'f32[1]{0:T(128)S(6)}', space=smem, size = 0x200, scoped, tag = 'scoped memory for tpu_custom_call.1']
  %s0 = inlined_call_operand.vmem [shape: f32[300,32], index: 0, kind: input, shape index: {}]
  %s1 = inlined_call_operand.vmem [shape: bf16[32,64], index: 1, kind: input, shape index: {}]
  %s2 = inlined_call_operand.vmem [shape: bf16[64,64], index: 2, kind: input, shape index: {}]
  %s3 = inlined_call_operand.vmem [shape: f32[3,64], index: 3, kind: input, shape index: {}]
  %s4 = inlined_call_operand.<no memory space> [shape: f32[1], index: 4, kind: input, shape index: {}]
  %s5 = inlined_call_operand.vmem [shape: f32[300,1], index: 5, kind: output, shape index: {}]
  %s6 = sld [smem:[#allocation0]]
  $region101: #{tpu_custom_call.1} parent=0
    _
  %s8 = ssub.s32 1, %s6
  %s9 = scalar_select 0, %s8, %s6
  %10 = sst [smem:[#allocation2]] %s4
  $region1: #{tpu_custom_call.1} parent=0
    #allocation3 [shape = 'u8[131072]{0}', space=vmem, size = 0x20000, scoped, tag = 'output window, operand 0']
    loop: start=0, step=1, limit=5
    $region2: #{tpu_custom_call.1} parent=1 // loop_pre_header
      _
    $region3: #{tpu_custom_call.1} parent=1 // loop_header
      %s12 = sphi 0, %s16
      %p13 = scmp.ge.s32.totalorder %s12, 5
      %s22 = sphi 0, %s24
      %s25 = sphi 0, %s22
      %s26 = sphi 0, %s25
      %s42 = sphi 0, %s26
      %s46 = sphi 0, %s46
      %s48 = sphi 0, %s46
      %s49 = sphi 0, %s48
      %s63 = sphi 0, %s49
      %s67 = sphi 0, %s67
      %s69 = sphi 0, %s67
      %s70 = sphi 0, %s69
      %s84 = sphi 0, %s70
      %s88 = sphi 0, %s88
      %s90 = sphi 0, %s88
      %s91 = sphi 0, %s90
      %s105 = sphi 0, %s91
      %s109 = sphi 0, %s109
      %s111 = sphi 0, %s109
      %s112 = sphi 0, %s111
      %s126 = sphi 0, %s112
      %s132 = sphi 0, %s134
      %s135 = sphi 0, %s132
      %s136 = sphi 0, %s135
      %s152 = sphi 0, %s136
    $region4: #{tpu_custom_call.1} parent=1 // loop_header_branch
      %15 = sbr.rel (%p13) target = $region8
    $region5: #{tpu_custom_call.1} parent=1 // loop_body
      %s17 = ssub.s32 %s12, 1
      %s18 = ssub.s32 %s12, 2
      %s19 = sadd.s32 %s12, 1
      %s20 = ssub.s32 %s12, %s19
      %p21 = scmp.eq.s32.totalorder %s20, 0
      %s23 = sadd.s32 %s22, 1
      %s24 = scalar_select %p21, %s22, %s23
      %p27 = pneg %p21
      %p28 = scmp.eq.s32.totalorder %s12, 2
      %p29 = por %p27, %p28
      %p30 = scmp.ne.s32.totalorder %s22, %s25
      %p31 = scmp.eq.s32.totalorder %s12, 0
      %p32 = por %p30, %p31
      %p33 = scmp.ne.s32.totalorder %s22, %s25
      %p34 = scmp.eq.s32.totalorder %s17, 2
      %p35 = por %p33, %p34
      %p36 = scmp.ne.s32.totalorder %s25, %s26
      %p37 = scmp.eq.s32.totalorder %s17, 0
      %p38 = por %p36, %p37
      %p39 = scmp.ne.s32.totalorder %s25, %s26
      %p40 = scmp.eq.s32.totalorder %s18, 2
      %p41 = por %p39, %p40
      %p43 = scmp.ne.s32.totalorder %s26, %s42
      %p44 = scmp.eq.s32.totalorder %s18, 0
      %p45 = por %p43, %p44
      %s47 = sadd.s32 %s46, 1
      %p50 = scmp.eq.s32.totalorder %s12, 2
      %p51 = scmp.ne.s32.totalorder %s46, %s48
      %p52 = scmp.eq.s32.totalorder %s12, 0
      %p53 = por %p51, %p52
      %p54 = scmp.ne.s32.totalorder %s46, %s48
      %p55 = scmp.eq.s32.totalorder %s17, 2
      %p56 = por %p54, %p55
      %p57 = scmp.ne.s32.totalorder %s48, %s49
      %p58 = scmp.eq.s32.totalorder %s17, 0
      %p59 = por %p57, %p58
      %p60 = scmp.ne.s32.totalorder %s48, %s49
      %p61 = scmp.eq.s32.totalorder %s18, 2
      %p62 = por %p60, %p61
      %p64 = scmp.ne.s32.totalorder %s49, %s63
      %p65 = scmp.eq.s32.totalorder %s18, 0
      %p66 = por %p64, %p65
      %s68 = sadd.s32 %s67, 1
      %p71 = scmp.eq.s32.totalorder %s12, 2
      %p72 = scmp.ne.s32.totalorder %s67, %s69
      %p73 = scmp.eq.s32.totalorder %s12, 0
      %p74 = por %p72, %p73
      %p75 = scmp.ne.s32.totalorder %s67, %s69
      %p76 = scmp.eq.s32.totalorder %s17, 2
      %p77 = por %p75, %p76
      %p78 = scmp.ne.s32.totalorder %s69, %s70
      %p79 = scmp.eq.s32.totalorder %s17, 0
      %p80 = por %p78, %p79
      %p81 = scmp.ne.s32.totalorder %s69, %s70
      %p82 = scmp.eq.s32.totalorder %s18, 2
      %p83 = por %p81, %p82
      %p85 = scmp.ne.s32.totalorder %s70, %s84
      %p86 = scmp.eq.s32.totalorder %s18, 0
      %p87 = por %p85, %p86
      %s89 = sadd.s32 %s88, 1
      %p92 = scmp.eq.s32.totalorder %s12, 2
      %p93 = scmp.ne.s32.totalorder %s88, %s90
      %p94 = scmp.eq.s32.totalorder %s12, 0
      %p95 = por %p93, %p94
      %p96 = scmp.ne.s32.totalorder %s88, %s90
      %p97 = scmp.eq.s32.totalorder %s17, 2
      %p98 = por %p96, %p97
      %p99 = scmp.ne.s32.totalorder %s90, %s91
      %p100 = scmp.eq.s32.totalorder %s17, 0
      %p101 = por %p99, %p100
      %p102 = scmp.ne.s32.totalorder %s90, %s91
      %p103 = scmp.eq.s32.totalorder %s18, 2
      %p104 = por %p102, %p103
      %p106 = scmp.ne.s32.totalorder %s91, %s105
      %p107 = scmp.eq.s32.totalorder %s18, 0
      %p108 = por %p106, %p107
      %s110 = sadd.s32 %s109, 1
      %p113 = scmp.eq.s32.totalorder %s12, 2
      %p114 = scmp.ne.s32.totalorder %s109, %s111
      %p115 = scmp.eq.s32.totalorder %s12, 0
      %p116 = por %p114, %p115
      %p117 = scmp.ne.s32.totalorder %s109, %s111
      %p118 = scmp.eq.s32.totalorder %s17, 2
      %p119 = por %p117, %p118
      %p120 = scmp.ne.s32.totalorder %s111, %s112
      %p121 = scmp.eq.s32.totalorder %s17, 0
      %p122 = por %p120, %p121
      %p123 = scmp.ne.s32.totalorder %s111, %s112
      %p124 = scmp.eq.s32.totalorder %s18, 2
      %p125 = por %p123, %p124
      %p127 = scmp.ne.s32.totalorder %s112, %s126
      %p128 = scmp.eq.s32.totalorder %s18, 0
      %p129 = por %p127, %p128
      %s130 = ssub.s32 %s12, %s19
      %p131 = scmp.eq.s32.totalorder %s130, 0
      %s133 = sadd.s32 %s132, 1
      %s134 = scalar_select %p131, %s132, %s133
      %p137 = pneg %p131
      %p138 = scmp.eq.s32.totalorder %s12, 2
      %p139 = por %p137, %p138
      %p140 = scmp.ne.s32.totalorder %s132, %s135
      %p141 = scmp.eq.s32.totalorder %s12, 0
      %p142 = por %p140, %p141
      %p143 = scmp.ne.s32.totalorder %s132, %s135
      %p144 = scmp.eq.s32.totalorder %s17, 2
      %p145 = por %p143, %p144
      %p146 = scmp.ne.s32.totalorder %s135, %s136
      %p147 = scmp.eq.s32.totalorder %s17, 0
      %p148 = por %p146, %p147
      %p149 = scmp.ne.s32.totalorder %s135, %s136
      %p150 = scmp.eq.s32.totalorder %s18, 2
      %p151 = por %p149, %p150
      %p153 = scmp.ne.s32.totalorder %s136, %s152
      %p154 = scmp.eq.s32.totalorder %s18, 0
      %p155 = por %p153, %p154
      %p156 = scmp.le.s32.totalorder 1, %s12
      %p157 = scmp.lt.s32.totalorder %s12, 4
      %p158 = pnand %p156, %p157
      %p159 = pneg %p158
      // Predicated region
      $region9: #{tpu_custom_call.1} parent=5 // pred_check
        _
      $region10: #{tpu_custom_call.1} parent=5 // pred_check_branch
        %161 = sbr.rel (%p158) target = $region12
      $region11: #{tpu_custom_call.1} parent=5 // pred_region
        %s162 = ssub.s32 %s12, 1
        // Predicated region
        $region13: #{tpu_custom_call.1} parent=11 // pred_check
          %p163 = pneg %p59
        $region14: #{tpu_custom_call.1} parent=11 // pred_check_branch
          %165 = sbr.rel (%p163) target = $region16
        $region15: #{tpu_custom_call.1} parent=11 // pred_region
          _
        $region16: #{tpu_custom_call.1} parent=11 // pred_fallthru
          _
        // Predicated region
        $region17: #{tpu_custom_call.1} parent=11 // pred_check
          %p166 = pneg %p80
        $region18: #{tpu_custom_call.1} parent=11 // pred_check_branch
          %168 = sbr.rel (%p166) target = $region20
        $region19: #{tpu_custom_call.1} parent=11 // pred_region
          _
        $region20: #{tpu_custom_call.1} parent=11 // pred_fallthru
          _
        // Predicated region
        $region21: #{tpu_custom_call.1} parent=11 // pred_check
          %p169 = pneg %p101
        $region22: #{tpu_custom_call.1} parent=11 // pred_check_branch
          %171 = sbr.rel (%p169) target = $region24
        $region23: #{tpu_custom_call.1} parent=11 // pred_region
          _
        $region24: #{tpu_custom_call.1} parent=11 // pred_fallthru
          _
        // Predicated region
        $region25: #{tpu_custom_call.1} parent=11 // pred_check
          %p172 = pneg %p122
        $region26: #{tpu_custom_call.1} parent=11 // pred_check_branch
          %174 = sbr.rel (%p172) target = $region28
        $region27: #{tpu_custom_call.1} parent=11 // pred_region
          _
        $region28: #{tpu_custom_call.1} parent=11 // pred_fallthru
          _
      $region12: #{tpu_custom_call.1} parent=5 // pred_fallthru
        _
      %p175 = scmp.lt.s32.totalorder %s12, 3
      // Predicated region
      $region29: #{tpu_custom_call.1} parent=5 // pred_check
        %p176 = pneg %p175
      $region30: #{tpu_custom_call.1} parent=5 // pred_check_branch
        %178 = sbr.rel (%p176) target = $region32
      $region31: #{tpu_custom_call.1} parent=5 // pred_region
        // Predicated region
        $region33: #{tpu_custom_call.1} parent=31 // pred_check
          %p179 = pneg %p32
        $region34: #{tpu_custom_call.1} parent=31 // pred_check_branch
          %181 = sbr.rel (%p179) target = $region36
        $region35: #{tpu_custom_call.1} parent=31 // pred_region
          %s182 = smul.u32 16, %s12
          %s183 = ssub.s32 38, %s182
          %p184 = scmp.lt.s32.totalorder %s183, 16
          %s185 = scalar_select %p184, %s183, 16
          %s186 = smul.u32 128, %s185
          %p187 = scmp.lt.s32.totalorder %s182, 37
          %s188 = scalar_select %p187, %s182, 37
          %s189 = smul.addr %s188, 8
          %s190 = scalar_lea.vmem %s0, %s189
          %s191 = smul.u32 16, %s12
          %s192 = ssub.s32 38, %s191
          %p193 = scmp.lt.s32.totalorder %s192, 16
          %s194 = scalar_select %p193, %s192, 16
          %s195 = smul.u32 128, %s194
        $region36: #{tpu_custom_call.1} parent=31 // pred_fallthru
          _
      $region32: #{tpu_custom_call.1} parent=5 // pred_fallthru
        _
      %p196 = scmp.le.s32.totalorder 1, %s12
      %p197 = scmp.lt.s32.totalorder %s12, 4
      %p198 = pnand %p196, %p197
      %p199 = pneg %p198
      // Predicated region
      $region37: #{tpu_custom_call.1} parent=5 // pred_check
        _
      $region38: #{tpu_custom_call.1} parent=5 // pred_check_branch
        %201 = sbr.rel (%p198) target = $region40
      $region39: #{tpu_custom_call.1} parent=5 // pred_region
        %s202 = ssub.s32 %s12, 1
        %s203 = smul.u32 16, %s17
        %s204 = ssub.s32 38, %s203
        %p205 = scmp.lt.s32.totalorder %s204, 16
        %s206 = scalar_select %p205, %s204, 16
        %s207 = smul.u32 128, %s206
        %p208 = scmp.lt.s32.totalorder %s203, 37
        %s209 = scalar_select %p208, %s203, 37
        %s210 = smul.addr %s209, 8
        %s211 = scalar_lea.vmem %s0, %s210
        %p212 = pneg %p38
        %p213 = pneg %p35
        %p214 = pneg %p59
        %p215 = pneg %p56
        %p216 = pneg %p80
        %p217 = pneg %p77
        %p218 = pneg %p101
        %p219 = pneg %p98
        %p220 = pneg %p122
        %p221 = pneg %p119
        %p222 = pneg %p148
        %p223 = pneg %p145
        %s224 = sand.u32 %s135, 1
        %s225 = sand.u32 %s135, 1
        %s226 = smul.addr %s225, 128
        %s227 = scalar_lea.vmem [#allocation3], %s226
        %s228 = smul.u32 16, %s17
        %s229 = ssub.s32 38, %s228
        %p230 = scmp.lt.s32.totalorder %s229, 16
        %s231 = scalar_select %p230, %s229, 16
        %s232 = smul.u32 128, %s231
        %p233 = scmp.lt.s32.totalorder %s228, 37
        %s234 = scalar_select %p233, %s228, 37
        %s235 = smul.addr %s234, 8
        %s236 = scalar_lea.vmem %s0, %s235
        %s237 = smul.u32 16, %s17
        %s238 = ssub.s32 38, %s237
        %p239 = scmp.lt.s32.totalorder %s238, 16
        %s240 = scalar_select %p239, %s238, 16
        %s241 = smul.u32 128, %s240
        %s242 = smul.u32 16, %s17
        %s243 = ssub.s32 38, %s242
        %p244 = scmp.lt.s32.totalorder %s243, 16
        %s245 = scalar_select %p244, %s243, 16
        %s246 = smul.u32 128, %s245
        %v248 = vld [vmem:[%s236] sm:$0xff]
        %v249 = vld [vmem:[%s236 + $0x8] sm:$0xff]
        %v250 = vld [vmem:[%s236 + $0x10] sm:$0xff]
        %v251 = vld [vmem:[%s236 + $0x18] sm:$0xff]
        %v252 = vld [vmem:[%s236 + $0x20] sm:$0xff]
        %v253 = vld [vmem:[%s236 + $0x28] sm:$0xff]
        %v254 = vld [vmem:[%s236 + $0x30] sm:$0xff]
        %v255 = vld [vmem:[%s236 + $0x38] sm:$0xff]
        %v256 = vld [vmem:[%s236 + $0x40] sm:$0xff]
        %v257 = vld [vmem:[%s236 + $0x48] sm:$0xff]
        %v258 = vld [vmem:[%s236 + $0x50] sm:$0xff]
        %v259 = vld [vmem:[%s236 + $0x58] sm:$0xff]
        %v260 = vld [vmem:[%s236 + $0x60] sm:$0xff]
        %v261 = vld [vmem:[%s236 + $0x68] sm:$0xff]
        %v262 = vld [vmem:[%s236 + $0x70] sm:$0xff]
        %v263 = vld [vmem:[%s236 + $0x78] sm:$0xff]
        %v264 = vpack.c.bf16 %v249, %v248
        %v265 = vpack.c.bf16 %v251, %v250
        %v266 = vpack.c.bf16 %v253, %v252
        %v267 = vpack.c.bf16 %v255, %v254
        %v268 = vpack.c.bf16 %v257, %v256
        %v269 = vpack.c.bf16 %v259, %v258
        %v270 = vpack.c.bf16 %v261, %v260
        %v271 = vpack.c.bf16 %v263, %v262
        %v272 = vld [vmem:[%s3] sm:$0x1]
        %v273 = vld [vmem:[%s3 + $0x1] sm:$0x1]
        %v274 = vld [vmem:[%s3 + $0x2] sm:$0x1]
        %v275 = vld [vmem:[%s1] sm:$0xf]
        %v276 = vld [vmem:[%s1 + $0x4] sm:$0xf]
        %v277 = vld [vmem:[%s1 + $0x8] sm:$0xf]
        %v278 = vld [vmem:[%s1 + $0xc] sm:$0xf]
        %v279 = vlaneseq
        %v280 = vshrl.u32 %v279, 7
        %v281 = vsub.s32 0, %v280
        %v282 = vrot.slane %v272, %v281
        %v287 = vunpack.c.l.b16 %v275
        %v288 = vunpack.c.l.b16 %v276
        %v289 = vunpack.c.l.b16 %v277
        %v290 = vunpack.c.l.b16 %v278
        %v291 = vpack.c.b16 %v288, %v287
        %v292 = vpack.c.b16 %v290, %v289
        %vm295 = vcmask 261120
        %v297 = vsel %vm295, %v264, 0
        %v300 = vsel %vm295, %v265, 0
        %v303 = vsel %vm295, %v266, 0
        %v306 = vsel %vm295, %v267, 0
        %v309 = vsel %vm295, %v268, 0
        %v312 = vsel %vm295, %v269, 0
        %v315 = vsel %vm295, %v270, 0
        %v318 = vsel %vm295, %v271, 0
        %320 = vmatprep.subr.bf16.mxu0 0
        %321 = vmatpush1.bf16.msra.mxu0 %v291
        %322 = vmatprep.subr.bf16.mxu0 0
        %323 = vmatpush1.bf16.msra.mxu0 %v292
        %324 = vmatprep.subr.bf16.mxu0 0
        %325 = vmatpush1.bf16.msra.mxu0 0
        %326 = vmatprep.subr.bf16.mxu0 0
        %327 = vmatpush1.bf16.msra.mxu0 0
        %328 = vmatprep.subr.bf16.mxu0 0
        %329 = vmatpush1.bf16.msra.mxu0 0
        %330 = vmatprep.subr.bf16.mxu0 0
        %331 = vmatpush1.bf16.msra.mxu0 0
        %332 = vmatprep.subr.bf16.mxu0 0
        %333 = vmatpush1.bf16.msra.mxu0 0
        %334 = vmatprep.subr.bf16.mxu0 0
        %335 = vmatpush1.bf16.msra.mxu0 0
        %336 = vmatprep.subr.bf16.mxu0 0
        %337 = vmatpush1.bf16.msra.mxu0 0
        %338 = vmatprep.subr.bf16.mxu0 0
        %339 = vmatpush1.bf16.msra.mxu0 0
        %340 = vmatprep.subr.bf16.mxu0 0
        %341 = vmatpush1.bf16.msra.mxu0 0
        %342 = vmatprep.subr.bf16.mxu0 0
        %343 = vmatpush1.bf16.msra.mxu0 0
        %344 = vmatprep.subr.bf16.mxu0 0
        %345 = vmatpush1.bf16.msra.mxu0 0
        %346 = vmatprep.subr.bf16.mxu0 0
        %347 = vmatpush1.bf16.msra.mxu0 0
        %348 = vmatprep.subr.bf16.mxu0 0
        %349 = vmatpush1.bf16.msra.mxu0 0
        %350 = vmatprep.subr.bf16.mxu0 0
        %351 = vmatpush1.bf16.msra.mxu0 0
        %352 = vmatprep.mubr.bf16.mxu0 0
        %353 = vmatmul.mubr.bf16.gmra.mrb[0].mxu0 %v297
        %v354 = vpop.f32.mrb[0].mxu0
        %v355 = vadd.f32 %v282, %v354
        %v356 = vpop.f32.mrb[0].mxu0
        %v357 = vpop.f32.mrb[0].mxu0
        %v358 = vadd.f32 %v282, %v357
        %v359 = vpop.f32.mrb[0].mxu0
        %360 = vmatprep.mubr.bf16.mxu0 0
        %361 = vmatmul.mubr.bf16.gmra.mrb[0].mxu0 %v300
        %v362 = vpop.f32.mrb[0].mxu0
        %v363 = vadd.f32 %v282, %v362
        %v364 = vpop.f32.mrb[0].mxu0
        %v365 = vpop.f32.mrb[0].mxu0
        %v366 = vadd.f32 %v282, %v365
        %v367 = vpop.f32.mrb[0].mxu0
        %368 = vmatprep.mubr.bf16.mxu0 0
        %369 = vmatmul.mubr.bf16.gmra.mrb[0].mxu0 %v303
        %v370 = vpop.f32.mrb[0].mxu0
        %v371 = vadd.f32 %v282, %v370
        %v372 = vpop.f32.mrb[0].mxu0
        %v373 = vpop.f32.mrb[0].mxu0
        %v374 = vadd.f32 %v282, %v373
        %v375 = vpop.f32.mrb[0].mxu0
        %376 = vmatprep.mubr.bf16.mxu0 0
        %377 = vmatmul.mubr.bf16.gmra.mrb[0].mxu0 %v306
        %v378 = vpop.f32.mrb[0].mxu0
        %v379 = vadd.f32 %v282, %v378
        %v380 = vpop.f32.mrb[0].mxu0
        %v381 = vpop.f32.mrb[0].mxu0
        %v382 = vadd.f32 %v282, %v381
        %v383 = vpop.f32.mrb[0].mxu0
        %384 = vmatprep.mubr.bf16.mxu0 0
        %385 = vmatmul.mubr.bf16.gmra.mrb[0].mxu0 %v309
        %v386 = vpop.f32.mrb[0].mxu0
        %v387 = vadd.f32 %v282, %v386
        %v388 = vpop.f32.mrb[0].mxu0
        %v389 = vpop.f32.mrb[0].mxu0
        %v390 = vadd.f32 %v282, %v389
        %v391 = vpop.f32.mrb[0].mxu0
        %392 = vmatprep.mubr.bf16.mxu0 0
        %393 = vmatmul.mubr.bf16.gmra.mrb[0].mxu0 %v312
        %v394 = vpop.f32.mrb[0].mxu0
        %v395 = vadd.f32 %v282, %v394
        %v396 = vpop.f32.mrb[0].mxu0
        %v397 = vpop.f32.mrb[0].mxu0
        %v398 = vadd.f32 %v282, %v397
        %v399 = vpop.f32.mrb[0].mxu0
        %400 = vmatprep.mubr.bf16.mxu0 0
        %401 = vmatmul.mubr.bf16.gmra.mrb[0].mxu0 %v315
        %v402 = vpop.f32.mrb[0].mxu0
        %v403 = vadd.f32 %v282, %v402
        %v404 = vpop.f32.mrb[0].mxu0
        %v405 = vpop.f32.mrb[0].mxu0
        %v406 = vadd.f32 %v282, %v405
        %v407 = vpop.f32.mrb[0].mxu0
        %408 = vmatprep.mubr.bf16.mxu0 0
        %409 = vmatmul.mubr.bf16.gmra.mrb[0].mxu0 %v318
        %v410 = vpop.f32.mrb[0].mxu0
        %v411 = vadd.f32 %v282, %v410
        %v412 = vpop.f32.mrb[0].mxu0
        %v413 = vpop.f32.mrb[0].mxu0
        %v414 = vadd.f32 %v282, %v413
        %v415 = vpop.f32.mrb[0].mxu0
        %416 = vdwg.mxu0
        %v417 = vpack.c.bf16 %v358, %v355
        %v418 = vpack.c.bf16 %v366, %v363
        %v419 = vpack.c.bf16 %v374, %v371
        %v420 = vpack.c.bf16 %v382, %v379
        %v421 = vpack.c.bf16 %v390, %v387
        %v422 = vpack.c.bf16 %v398, %v395
        %v423 = vpack.c.bf16 %v406, %v403
        %v424 = vpack.c.bf16 %v414, %v411
        %v425 = vtanh.bf16.pop %v417
        %v426 = vtanh.bf16.pop %v418
        %v427 = vtanh.bf16.pop %v419
        %v428 = vtanh.bf16.pop %v420
        %v429 = vtanh.bf16.pop %v421
        %v430 = vtanh.bf16.pop %v422
        %v431 = vtanh.bf16.pop %v423
        %v432 = vtanh.bf16.pop %v424
        %v433 = vld [vmem:[%s2] sm:$0xf]
        %v434 = vld [vmem:[%s2 + $0x4] sm:$0xf]
        %v435 = vld [vmem:[%s2 + $0x8] sm:$0xf]
        %v436 = vld [vmem:[%s2 + $0xc] sm:$0xf]
        %v437 = vld [vmem:[%s2 + $0x10] sm:$0xf]
        %v438 = vld [vmem:[%s2 + $0x14] sm:$0xf]
        %v439 = vld [vmem:[%s2 + $0x18] sm:$0xf]
        %v440 = vld [vmem:[%s2 + $0x1c] sm:$0xf]
        %v441 = vlaneseq
        %v442 = vshrl.u32 %v441, 7
        %v443 = vsub.s32 0, %v442
        %v444 = vrot.slane %v273, %v443
        %v453 = vunpack.c.l.b16 %v433
        %v454 = vunpack.c.l.b16 %v434
        %v455 = vunpack.c.l.b16 %v435
        %v456 = vunpack.c.l.b16 %v436
        %v457 = vunpack.c.l.b16 %v437
        %v458 = vunpack.c.l.b16 %v438
        %v459 = vunpack.c.l.b16 %v439
        %v460 = vunpack.c.l.b16 %v440
        %v461 = vpack.c.b16 %v454, %v453
        %v462 = vpack.c.b16 %v456, %v455
        %v463 = vpack.c.b16 %v458, %v457
        %v464 = vpack.c.b16 %v460, %v459
        %vm469 = vcmask 523264
        %v471 = vsel %vm469, %v425, 0
        %v474 = vsel %vm469, %v426, 0
        %v477 = vsel %vm469, %v427, 0
        %v480 = vsel %vm469, %v428, 0
        %v483 = vsel %vm469, %v429, 0
        %v486 = vsel %vm469, %v430, 0
        %v489 = vsel %vm469, %v431, 0
        %v492 = vsel %vm469, %v432, 0
        %494 = vmatprep.subr.bf16.mxu0 0
        %495 = vmatpush1.bf16.msra.mxu0 %v461
        %496 = vmatprep.subr.bf16.mxu0 0
        %497 = vmatpush1.bf16.msra.mxu0 %v462
        %498 = vmatprep.subr.bf16.mxu0 0
        %499 = vmatpush1.bf16.msra.mxu0 %v463
        %500 = vmatprep.subr.bf16.mxu0 0
        %501 = vmatpush1.bf16.msra.mxu0 %v464
        %502 = vmatprep.subr.bf16.mxu0 0
        %503 = vmatpush1.bf16.msra.mxu0 0
        %504 = vmatprep.subr.bf16.mxu0 0
        %505 = vmatpush1.bf16.msra.mxu0 0
        %506 = vmatprep.subr.bf16.mxu0 0
        %507 = vmatpush1.bf16.msra.mxu0 0
        %508 = vmatprep.subr.bf16.mxu0 0
        %509 = vmatpush1.bf16.msra.mxu0 0
        %510 = vmatprep.subr.bf16.mxu0 0
        %511 = vmatpush1.bf16.msra.mxu0 0
        %512 = vmatprep.subr.bf16.mxu0 0
        %513 = vmatpush1.bf16.msra.mxu0 0
        %514 = vmatprep.subr.bf16.mxu0 0
        %515 = vmatpush1.bf16.msra.mxu0 0
        %516 = vmatprep.subr.bf16.mxu0 0
        %517 = vmatpush1.bf16.msra.mxu0 0
        %518 = vmatprep.subr.bf16.mxu0 0
        %519 = vmatpush1.bf16.msra.mxu0 0
        %520 = vmatprep.subr.bf16.mxu0 0
        %521 = vmatpush1.bf16.msra.mxu0 0
        %522 = vmatprep.subr.bf16.mxu0 0
        %523 = vmatpush1.bf16.msra.mxu0 0
        %524 = vmatprep.subr.bf16.mxu0 0
        %525 = vmatpush1.bf16.msra.mxu0 0
        %526 = vmatprep.mubr.bf16.mxu0 0
        %527 = vmatmul.mubr.bf16.gmra.mrb[0].mxu0 %v471
        %v528 = vpop.f32.mrb[0].mxu0
        %v529 = vadd.f32 %v444, %v528
        %v530 = vpop.f32.mrb[0].mxu0
        %v531 = vpop.f32.mrb[0].mxu0
        %v532 = vadd.f32 %v444, %v531
        %v533 = vpop.f32.mrb[0].mxu0
        %534 = vmatprep.mubr.bf16.mxu0 0
        %535 = vmatmul.mubr.bf16.gmra.mrb[0].mxu0 %v474
        %v536 = vpop.f32.mrb[0].mxu0
        %v537 = vadd.f32 %v444, %v536
        %v538 = vpop.f32.mrb[0].mxu0
        %v539 = vpop.f32.mrb[0].mxu0
        %v540 = vadd.f32 %v444, %v539
        %v541 = vpop.f32.mrb[0].mxu0
        %542 = vmatprep.mubr.bf16.mxu0 0
        %543 = vmatmul.mubr.bf16.gmra.mrb[0].mxu0 %v477
        %v544 = vpop.f32.mrb[0].mxu0
        %v545 = vadd.f32 %v444, %v544
        %v546 = vpop.f32.mrb[0].mxu0
        %v547 = vpop.f32.mrb[0].mxu0
        %v548 = vadd.f32 %v444, %v547
        %v549 = vpop.f32.mrb[0].mxu0
        %550 = vmatprep.mubr.bf16.mxu0 0
        %551 = vmatmul.mubr.bf16.gmra.mrb[0].mxu0 %v480
        %v552 = vpop.f32.mrb[0].mxu0
        %v553 = vadd.f32 %v444, %v552
        %v554 = vpop.f32.mrb[0].mxu0
        %v555 = vpop.f32.mrb[0].mxu0
        %v556 = vadd.f32 %v444, %v555
        %v557 = vpop.f32.mrb[0].mxu0
        %558 = vmatprep.mubr.bf16.mxu0 0
        %559 = vmatmul.mubr.bf16.gmra.mrb[0].mxu0 %v483
        %v560 = vpop.f32.mrb[0].mxu0
        %v561 = vadd.f32 %v444, %v560
        %v562 = vpop.f32.mrb[0].mxu0
        %v563 = vpop.f32.mrb[0].mxu0
        %v564 = vadd.f32 %v444, %v563
        %v565 = vpop.f32.mrb[0].mxu0
        %566 = vmatprep.mubr.bf16.mxu0 0
        %567 = vmatmul.mubr.bf16.gmra.mrb[0].mxu0 %v486
        %v568 = vpop.f32.mrb[0].mxu0
        %v569 = vadd.f32 %v444, %v568
        %v570 = vpop.f32.mrb[0].mxu0
        %v571 = vpop.f32.mrb[0].mxu0
        %v572 = vadd.f32 %v444, %v571
        %v573 = vpop.f32.mrb[0].mxu0
        %574 = vmatprep.mubr.bf16.mxu0 0
        %575 = vmatmul.mubr.bf16.gmra.mrb[0].mxu0 %v489
        %v576 = vpop.f32.mrb[0].mxu0
        %v577 = vadd.f32 %v444, %v576
        %v578 = vpop.f32.mrb[0].mxu0
        %v579 = vpop.f32.mrb[0].mxu0
        %v580 = vadd.f32 %v444, %v579
        %v581 = vpop.f32.mrb[0].mxu0
        %582 = vmatprep.mubr.bf16.mxu0 0
        %583 = vmatmul.mubr.bf16.gmra.mrb[0].mxu0 %v492
        %v584 = vpop.f32.mrb[0].mxu0
        %v585 = vadd.f32 %v444, %v584
        %v586 = vpop.f32.mrb[0].mxu0
        %v587 = vpop.f32.mrb[0].mxu0
        %v588 = vadd.f32 %v444, %v587
        %v589 = vpop.f32.mrb[0].mxu0
        %590 = vdwg.mxu0
        %v591 = vpack.c.bf16 %v532, %v529
        %v592 = vpack.c.bf16 %v540, %v537
        %v593 = vpack.c.bf16 %v548, %v545
        %v594 = vpack.c.bf16 %v556, %v553
        %v595 = vpack.c.bf16 %v564, %v561
        %v596 = vpack.c.bf16 %v572, %v569
        %v597 = vpack.c.bf16 %v580, %v577
        %v598 = vpack.c.bf16 %v588, %v585
        %v599 = vtanh.bf16.pop %v591
        %v600 = vtanh.bf16.pop %v592
        %v601 = vtanh.bf16.pop %v593
        %v602 = vtanh.bf16.pop %v594
        %v603 = vtanh.bf16.pop %v595
        %v604 = vtanh.bf16.pop %v596
        %v605 = vtanh.bf16.pop %v597
        %v606 = vtanh.bf16.pop %v598
        %v607 = vunpack.c.l.bf16 %v599
        %v608 = vunpack.c.h.bf16 %v599
        %v609 = vunpack.c.l.bf16 %v600
        %v610 = vunpack.c.h.bf16 %v600
        %v611 = vunpack.c.l.bf16 %v601
        %v612 = vunpack.c.h.bf16 %v601
        %v613 = vunpack.c.l.bf16 %v602
        %v614 = vunpack.c.h.bf16 %v602
        %v615 = vunpack.c.l.bf16 %v603
        %v616 = vunpack.c.h.bf16 %v603
        %v617 = vunpack.c.l.bf16 %v604
        %v618 = vunpack.c.h.bf16 %v604
        %v619 = vunpack.c.l.bf16 %v605
        %v620 = vunpack.c.h.bf16 %v605
        %v621 = vunpack.c.l.bf16 %v606
        %v622 = vunpack.c.h.bf16 %v606
        %v623 = vlaneseq
        %v624 = vshrl.u32 %v623, 7
        %v625 = vsub.s32 0, %v624
        %v626 = vrot.slane %v274, %v625
        %v627 = vmul.f32 %v607, %v626
        %v628 = vmul.f32 %v608, %v626
        %v629 = vmul.f32 %v609, %v626
        %v630 = vmul.f32 %v610, %v626
        %v631 = vmul.f32 %v611, %v626
        %v632 = vmul.f32 %v612, %v626
        %v633 = vmul.f32 %v613, %v626
        %v634 = vmul.f32 %v614, %v626
        %v635 = vmul.f32 %v615, %v626
        %v636 = vmul.f32 %v616, %v626
        %v637 = vmul.f32 %v617, %v626
        %v638 = vmul.f32 %v618, %v626
        %v639 = vmul.f32 %v619, %v626
        %v640 = vmul.f32 %v620, %v626
        %v641 = vmul.f32 %v621, %v626
        %v642 = vmul.f32 %v622, %v626
        %v643 = vsel %vm469, %v627, 0.0
        %644 = vadd.xlane.f32.xlu0 %v643
        %v645 = vpop.xlane.xlu0 %644
        %v646 = vsel %vm469, %v628, 0.0
        %647 = vadd.xlane.f32.xlu0 %v646
        %v648 = vpop.xlane.xlu0 %647
        %v649 = vsel %vm469, %v629, 0.0
        %650 = vadd.xlane.f32.xlu0 %v649
        %v651 = vpop.xlane.xlu0 %650
        %v652 = vsel %vm469, %v630, 0.0
        %653 = vadd.xlane.f32.xlu0 %v652
        %v654 = vpop.xlane.xlu0 %653
        %v655 = vsel %vm469, %v631, 0.0
        %656 = vadd.xlane.f32.xlu0 %v655
        %v657 = vpop.xlane.xlu0 %656
        %v658 = vsel %vm469, %v632, 0.0
        %659 = vadd.xlane.f32.xlu0 %v658
        %v660 = vpop.xlane.xlu0 %659
        %v661 = vsel %vm469, %v633, 0.0
        %662 = vadd.xlane.f32.xlu0 %v661
        %v663 = vpop.xlane.xlu0 %662
        %v664 = vsel %vm469, %v634, 0.0
        %665 = vadd.xlane.f32.xlu0 %v664
        %v666 = vpop.xlane.xlu0 %665
        %v667 = vsel %vm469, %v635, 0.0
        %668 = vadd.xlane.f32.xlu0 %v667
        %v669 = vpop.xlane.xlu0 %668
        %v670 = vsel %vm469, %v636, 0.0
        %671 = vadd.xlane.f32.xlu0 %v670
        %v672 = vpop.xlane.xlu0 %671
        %v673 = vsel %vm469, %v637, 0.0
        %674 = vadd.xlane.f32.xlu0 %v673
        %v675 = vpop.xlane.xlu0 %674
        %v676 = vsel %vm469, %v638, 0.0
        %677 = vadd.xlane.f32.xlu0 %v676
        %v678 = vpop.xlane.xlu0 %677
        %v679 = vsel %vm469, %v639, 0.0
        %680 = vadd.xlane.f32.xlu0 %v679
        %v681 = vpop.xlane.xlu0 %680
        %v682 = vsel %vm469, %v640, 0.0
        %683 = vadd.xlane.f32.xlu0 %v682
        %v684 = vpop.xlane.xlu0 %683
        %v685 = vsel %vm469, %v641, 0.0
        %686 = vadd.xlane.f32.xlu0 %v685
        %v687 = vpop.xlane.xlu0 %686
        %v688 = vsel %vm469, %v642, 0.0
        %689 = vadd.xlane.f32.xlu0 %v688
        %v690 = vpop.xlane.xlu0 %689
        %s691 = sld [smem:[#allocation2]]
        %v692 = vstv %s691
        %v693 = vadd.f32 %v645, %v692
        %v694 = vadd.f32 %v648, %v692
        %v695 = vadd.f32 %v651, %v692
        %v696 = vadd.f32 %v654, %v692
        %v697 = vadd.f32 %v657, %v692
        %v698 = vadd.f32 %v660, %v692
        %v699 = vadd.f32 %v663, %v692
        %v700 = vadd.f32 %v666, %v692
        %v701 = vadd.f32 %v669, %v692
        %v702 = vadd.f32 %v672, %v692
        %v703 = vadd.f32 %v675, %v692
        %v704 = vadd.f32 %v678, %v692
        %v705 = vadd.f32 %v681, %v692
        %v706 = vadd.f32 %v684, %v692
        %v707 = vadd.f32 %v687, %v692
        %v708 = vadd.f32 %v690, %v692
        %vm709 = vcmask 7168
        %710 = vst.msk [vmem:[%s227] sm:$0xff] %vm709, %v693
        %711 = vst.msk [vmem:[%s227 + $0x8] sm:$0xff] %vm709, %v694
        %712 = vst.msk [vmem:[%s227 + $0x10] sm:$0xff] %vm709, %v695
        %713 = vst.msk [vmem:[%s227 + $0x18] sm:$0xff] %vm709, %v696
        %714 = vst.msk [vmem:[%s227 + $0x20] sm:$0xff] %vm709, %v697
        %715 = vst.msk [vmem:[%s227 + $0x28] sm:$0xff] %vm709, %v698
        %716 = vst.msk [vmem:[%s227 + $0x30] sm:$0xff] %vm709, %v699
        %717 = vst.msk [vmem:[%s227 + $0x38] sm:$0xff] %vm709, %v700
        %718 = vst.msk [vmem:[%s227 + $0x40] sm:$0xff] %vm709, %v701
        %719 = vst.msk [vmem:[%s227 + $0x48] sm:$0xff] %vm709, %v702
        %720 = vst.msk [vmem:[%s227 + $0x50] sm:$0xff] %vm709, %v703
        %721 = vst.msk [vmem:[%s227 + $0x58] sm:$0xff] %vm709, %v704
        %722 = vst.msk [vmem:[%s227 + $0x60] sm:$0xff] %vm709, %v705
        %723 = vst.msk [vmem:[%s227 + $0x68] sm:$0xff] %vm709, %v706
        %724 = vst.msk [vmem:[%s227 + $0x70] sm:$0xff] %vm709, %v707
        %725 = vst.msk [vmem:[%s227 + $0x78] sm:$0xff] %vm709, %v708
        %s726 = sand.u32 %s135, 1
        %s727 = sand.u32 %s135, 1
        %s728 = smul.addr %s727, 128
        %s729 = scalar_lea.vmem [#allocation3], %s728
        // Predicated region
        $region41: #{tpu_custom_call.1} parent=39 // pred_check
          %p730 = pneg %p145
        $region42: #{tpu_custom_call.1} parent=39 // pred_check_branch
          %732 = sbr.rel (%p730) target = $region44
        $region43: #{tpu_custom_call.1} parent=39 // pred_region
          %s733 = smul.u32 16, %s17
          %s734 = ssub.s32 38, %s733
          %p735 = scmp.lt.s32.totalorder %s734, 16
          %s736 = scalar_select %p735, %s734, 16
          %s737 = smul.u32 128, %s736
          %p738 = scmp.ne.s32.totalorder 0, %s737
          %s739 = smul.addr %s733, 8
          %s740 = scalar_lea.vmem %s5, %s739
          // Predicated region
          $region45: #{tpu_custom_call.1} parent=43 // pred_check
            %p741 = pneg %p738
          $region46: #{tpu_custom_call.1} parent=43 // pred_check_branch
            %743 = sbr.rel (%p741) target = $region48
          $region47: #{tpu_custom_call.1} parent=43 // pred_region
            // Predicated region
            $region49: #{tpu_custom_call.1} parent=47 // pred_check
              _
            $region50: #{tpu_custom_call.1} parent=47 // pred_check_branch
              %745 = sbr.rel (0) target = $region52
            $region51: #{tpu_custom_call.1} parent=47 // pred_region
              // Predicated region
              $region71: #{tpu_custom_call.1} parent=51 // pred_check
                _
              $region72: #{tpu_custom_call.1} parent=51 // pred_check_branch
                %824 = sbr.rel (0) target = $region74
              $region73: #{tpu_custom_call.1} parent=51 // pred_region
                %s825 = sshrl.u32 %s736, 4
                // While loop
                $region75: #{tpu_custom_call.1} parent=73 // loop_pre_header
                  _
                $region76: #{tpu_custom_call.1} parent=73 // loop_header
                  %s827 = sphi 0, %s829
                  %p828 = scmp.ge.s32.totalorder %s827, %s825
                  %s832 = sphi 0, %s869
                  %s833 = sphi %s729, %s872
                  %s834 = sphi %s740, %s873
                $region77: #{tpu_custom_call.1} parent=73 // loop_header_branch
                  %831 = sbr.rel (%p828) target = $region81
                $region78: #{tpu_custom_call.1} parent=73 // loop_body
                  %v835 = vld [vmem:[%s833] sm:$0xff]
                  %836 = vst [vmem:[%s834] sm:$0xff] %v835
                  %v837 = vld [vmem:[%s833 + $0x8] sm:$0xff]
                  %838 = vst [vmem:[%s834 + $0x8] sm:$0xff] %v837
                  %v839 = vld [vmem:[%s833 + $0x10] sm:$0xff]
                  %840 = vst [vmem:[%s834 + $0x10] sm:$0xff] %v839
                  %v841 = vld [vmem:[%s833 + $0x18] sm:$0xff]
                  %842 = vst [vmem:[%s834 + $0x18] sm:$0xff] %v841
                  %v843 = vld [vmem:[%s833 + $0x20] sm:$0xff]
                  %844 = vst [vmem:[%s834 + $0x20] sm:$0xff] %v843
                  %v845 = vld [vmem:[%s833 + $0x28] sm:$0xff]
                  %846 = vst [vmem:[%s834 + $0x28] sm:$0xff] %v845
                  %v847 = vld [vmem:[%s833 + $0x30] sm:$0xff]
                  %848 = vst [vmem:[%s834 + $0x30] sm:$0xff] %v847
                  %v849 = vld [vmem:[%s833 + $0x38] sm:$0xff]
                  %850 = vst [vmem:[%s834 + $0x38] sm:$0xff] %v849
                  %v851 = vld [vmem:[%s833 + $0x40] sm:$0xff]
                  %852 = vst [vmem:[%s834 + $0x40] sm:$0xff] %v851
                  %v853 = vld [vmem:[%s833 + $0x48] sm:$0xff]
                  %854 = vst [vmem:[%s834 + $0x48] sm:$0xff] %v853
                  %v855 = vld [vmem:[%s833 + $0x50] sm:$0xff]
                  %856 = vst [vmem:[%s834 + $0x50] sm:$0xff] %v855
                  %v857 = vld [vmem:[%s833 + $0x58] sm:$0xff]
                  %858 = vst [vmem:[%s834 + $0x58] sm:$0xff] %v857
                  %v859 = vld [vmem:[%s833 + $0x60] sm:$0xff]
                  %860 = vst [vmem:[%s834 + $0x60] sm:$0xff] %v859
                  %v861 = vld [vmem:[%s833 + $0x68] sm:$0xff]
                  %862 = vst [vmem:[%s834 + $0x68] sm:$0xff] %v861
                  %v863 = vld [vmem:[%s833 + $0x70] sm:$0xff]
                  %864 = vst [vmem:[%s834 + $0x70] sm:$0xff] %v863
                  %v865 = vld [vmem:[%s833 + $0x78] sm:$0xff]
                  %866 = vst [vmem:[%s834 + $0x78] sm:$0xff] %v865
                  %s867 = sadd.s32 1, %s832
                  %p868 = scmp.ge.s32.totalorder %s867, %s825
                  %s869 = scalar_select %p868, 0, %s867
                  %s870 = smul.u32 %s869, 128
                  %s871 = smul.u32 %s869, 128
                  %s872 = scalar_lea.vmem %s729, %s870 [#allocation3]
                  %s873 = scalar_lea.vmem %s740, %s871
                $region79: #{tpu_custom_call.1} parent=73 // loop_footer
                  %s829 = sadd.s32 %s827, 1
                $region80: #{tpu_custom_call.1} parent=73 // loop_footer_branch
                  %826 = sbr.rel target = $region76
                $region81: #{tpu_custom_call.1} parent=73 // loop_exit
                  _
                %s874 = sshrl.u32 %s736, 4
                %s875 = sand.u32 %s736, 15
                %s876 = smul.u32 %s874, 16
                %s877 = smul.u32 8, %s876
                %s878 = scalar_lea.vmem %s729, %s877 [#allocation3]
                %s879 = smul.u32 8, %s876
                %s880 = scalar_lea.vmem %s740, %s879
                // While loop
                $region82: #{tpu_custom_call.1} parent=73 // loop_pre_header
                  _
                $region83: #{tpu_custom_call.1} parent=73 // loop_header
                  %s882 = sphi 0, %s884
                  %p883 = scmp.ge.s32.totalorder %s882, %s875
                  %s887 = sphi 0, %s894
                  %s888 = sphi %s878, %s897
                  %s889 = sphi %s880, %s898
                $region84: #{tpu_custom_call.1} parent=73 // loop_header_branch
                  %886 = sbr.rel (%p883) target = $region88
                $region85: #{tpu_custom_call.1} parent=73 // loop_body
                  %v890 = vld [vmem:[%s888] sm:$0xff]
                  %891 = vst [vmem:[%s889] sm:$0xff] %v890
                  %s892 = sadd.s32 1, %s887
                  %p893 = scmp.ge.s32.totalorder %s892, %s875
                  %s894 = scalar_select %p893, 0, %s892
                  %s895 = smul.u32 %s894, 8
                  %s896 = smul.u32 %s894, 8
                  %s897 = scalar_lea.vmem %s878, %s895 [#allocation3]
                  %s898 = scalar_lea.vmem %s880, %s896
                $region86: #{tpu_custom_call.1} parent=73 // loop_footer
                  %s884 = sadd.s32 %s882, 1
                $region87: #{tpu_custom_call.1} parent=73 // loop_footer_branch
                  %881 = sbr.rel target = $region83
                $region88: #{tpu_custom_call.1} parent=73 // loop_exit
                  _
              $region74: #{tpu_custom_call.1} parent=51 // pred_fallthru
                _
              // Predicated region
              $region89: #{tpu_custom_call.1} parent=51 // pred_check
                _
              $region90: #{tpu_custom_call.1} parent=51 // pred_check_branch
                %900 = sbr.rel target = $region92
              $region91: #{tpu_custom_call.1} parent=51 // pred_region
                _
              $region92: #{tpu_custom_call.1} parent=51 // pred_fallthru
                _
            $region52: #{tpu_custom_call.1} parent=47 // pred_fallthru
              _
            // Predicated region
            $region53: #{tpu_custom_call.1} parent=47 // pred_check
              _
            $region54: #{tpu_custom_call.1} parent=47 // pred_check_branch
              %747 = sbr.rel target = $region56
            $region55: #{tpu_custom_call.1} parent=47 // pred_region
              %s749 = sshrl.u32 %s736, 4
              // While loop
              $region57: #{tpu_custom_call.1} parent=55 // loop_pre_header
                _
              $region58: #{tpu_custom_call.1} parent=55 // loop_header
                %s751 = sphi 0, %s753
                %p752 = scmp.ge.s32.totalorder %s751, %s749
                %s756 = sphi 0, %s793
                %s757 = sphi %s729, %s796
                %s758 = sphi %s740, %s797
              $region59: #{tpu_custom_call.1} parent=55 // loop_header_branch
                %755 = sbr.rel (%p752) target = $region63
              $region60: #{tpu_custom_call.1} parent=55 // loop_body
                %v759 = vld [vmem:[%s757] sm:$0xff]
                %760 = vst [vmem:[%s758] sm:$0xff] %v759
                %v761 = vld [vmem:[%s757 + $0x8] sm:$0xff]
                %762 = vst [vmem:[%s758 + $0x8] sm:$0xff] %v761
                %v763 = vld [vmem:[%s757 + $0x10] sm:$0xff]
                %764 = vst [vmem:[%s758 + $0x10] sm:$0xff] %v763
                %v765 = vld [vmem:[%s757 + $0x18] sm:$0xff]
                %766 = vst [vmem:[%s758 + $0x18] sm:$0xff] %v765
                %v767 = vld [vmem:[%s757 + $0x20] sm:$0xff]
                %768 = vst [vmem:[%s758 + $0x20] sm:$0xff] %v767
                %v769 = vld [vmem:[%s757 + $0x28] sm:$0xff]
                %770 = vst [vmem:[%s758 + $0x28] sm:$0xff] %v769
                %v771 = vld [vmem:[%s757 + $0x30] sm:$0xff]
                %772 = vst [vmem:[%s758 + $0x30] sm:$0xff] %v771
                %v773 = vld [vmem:[%s757 + $0x38] sm:$0xff]
                %774 = vst [vmem:[%s758 + $0x38] sm:$0xff] %v773
                %v775 = vld [vmem:[%s757 + $0x40] sm:$0xff]
                %776 = vst [vmem:[%s758 + $0x40] sm:$0xff] %v775
                %v777 = vld [vmem:[%s757 + $0x48] sm:$0xff]
                %778 = vst [vmem:[%s758 + $0x48] sm:$0xff] %v777
                %v779 = vld [vmem:[%s757 + $0x50] sm:$0xff]
                %780 = vst [vmem:[%s758 + $0x50] sm:$0xff] %v779
                %v781 = vld [vmem:[%s757 + $0x58] sm:$0xff]
                %782 = vst [vmem:[%s758 + $0x58] sm:$0xff] %v781
                %v783 = vld [vmem:[%s757 + $0x60] sm:$0xff]
                %784 = vst [vmem:[%s758 + $0x60] sm:$0xff] %v783
                %v785 = vld [vmem:[%s757 + $0x68] sm:$0xff]
                %786 = vst [vmem:[%s758 + $0x68] sm:$0xff] %v785
                %v787 = vld [vmem:[%s757 + $0x70] sm:$0xff]
                %788 = vst [vmem:[%s758 + $0x70] sm:$0xff] %v787
                %v789 = vld [vmem:[%s757 + $0x78] sm:$0xff]
                %790 = vst [vmem:[%s758 + $0x78] sm:$0xff] %v789
                %s791 = sadd.s32 1, %s756
                %p792 = scmp.ge.s32.totalorder %s791, %s749
                %s793 = scalar_select %p792, 0, %s791
                %s794 = smul.u32 %s793, 128
                %s795 = smul.u32 %s793, 128
                %s796 = scalar_lea.vmem %s729, %s794 [#allocation3]
                %s797 = scalar_lea.vmem %s740, %s795
              $region61: #{tpu_custom_call.1} parent=55 // loop_footer
                %s753 = sadd.s32 %s751, 1
              $region62: #{tpu_custom_call.1} parent=55 // loop_footer_branch
                %750 = sbr.rel target = $region58
              $region63: #{tpu_custom_call.1} parent=55 // loop_exit
                _
              %s798 = sshrl.u32 %s736, 4
              %s799 = sand.u32 %s736, 15
              %s800 = smul.u32 %s798, 16
              %s801 = smul.u32 8, %s800
              %s802 = scalar_lea.vmem %s729, %s801 [#allocation3]
              %s803 = smul.u32 8, %s800
              %s804 = scalar_lea.vmem %s740, %s803
              // While loop
              $region64: #{tpu_custom_call.1} parent=55 // loop_pre_header
                _
              $region65: #{tpu_custom_call.1} parent=55 // loop_header
                %s806 = sphi 0, %s808
                %p807 = scmp.ge.s32.totalorder %s806, %s799
                %s811 = sphi 0, %s818
                %s812 = sphi %s802, %s821
                %s813 = sphi %s804, %s822
              $region66: #{tpu_custom_call.1} parent=55 // loop_header_branch
                %810 = sbr.rel (%p807) target = $region70
              $region67: #{tpu_custom_call.1} parent=55 // loop_body
                %v814 = vld [vmem:[%s812] sm:$0xff]
                %815 = vst [vmem:[%s813] sm:$0xff] %v814
                %s816 = sadd.s32 1, %s811
                %p817 = scmp.ge.s32.totalorder %s816, %s799
                %s818 = scalar_select %p817, 0, %s816
                %s819 = smul.u32 %s818, 8
                %s820 = smul.u32 %s818, 8
                %s821 = scalar_lea.vmem %s802, %s819 [#allocation3]
                %s822 = scalar_lea.vmem %s804, %s820
              $region68: #{tpu_custom_call.1} parent=55 // loop_footer
                %s808 = sadd.s32 %s806, 1
              $region69: #{tpu_custom_call.1} parent=55 // loop_footer_branch
                %805 = sbr.rel target = $region65
              $region70: #{tpu_custom_call.1} parent=55 // loop_exit
                _
            $region56: #{tpu_custom_call.1} parent=47 // pred_fallthru
              _
          $region48: #{tpu_custom_call.1} parent=43 // pred_fallthru
            _
          %901 = vnop
        $region44: #{tpu_custom_call.1} parent=39 // pred_fallthru
          _
      $region40: #{tpu_custom_call.1} parent=5 // pred_fallthru
        _
      %p902 = scmp.le.s32.totalorder 2, %s12
      // Predicated region
      $region93: #{tpu_custom_call.1} parent=5 // pred_check
        %p903 = pneg %p902
      $region94: #{tpu_custom_call.1} parent=5 // pred_check_branch
        %905 = sbr.rel (%p903) target = $region96
      $region95: #{tpu_custom_call.1} parent=5 // pred_region
        %s906 = ssub.s32 %s12, 2
        // Predicated region
        $region97: #{tpu_custom_call.1} parent=95 // pred_check
          %p907 = pneg %p151
        $region98: #{tpu_custom_call.1} parent=95 // pred_check_branch
          %909 = sbr.rel (%p907) target = $region100
        $region99: #{tpu_custom_call.1} parent=95 // pred_region
          %s910 = sand.u32 %s136, 1
          %s911 = sand.u32 %s136, 1
          %s912 = smul.addr %s911, 128
          %s913 = scalar_lea.vmem [#allocation3], %s912
        $region100: #{tpu_custom_call.1} parent=95 // pred_fallthru
          _
      $region96: #{tpu_custom_call.1} parent=5 // pred_fallthru
        _
    $region6: #{tpu_custom_call.1} parent=1 // loop_footer
      %s16 = sadd.s32 1, %s12
    $region7: #{tpu_custom_call.1} parent=1 // loop_footer_branch
      %11 = sbr.rel target = $region3
    $region8: #{tpu_custom_call.1} parent=1 // loop_exit
      _

</llo_original>
